<compile_context>
chip_gen: v7x
topology: tpu7x:2x2x1
jax: 0.10.0
libtpu: 0.0.40
codegen_flags: <defaults>
</compile_context>

<pallas_src>
import functools

import jax
import jax.numpy as jnp
import numpy as np
from jax.experimental import pallas as pl
from jax.experimental.pallas import tpu as pltpu

LOG_STD_MAX = -1.0
LOG_STD_MIN = -10.0
LOG_STD_INIT = -2.0
HALF_LOG_2PI = 0.9189385332046727  # 0.5 * log(2*pi)


def _ac_kernel(given_a, out_dim,
               x_ref, aeps_ref,
               w1_ref, b1_ref, w2_ref, b2_ref, w3_ref, b3_ref,
               dc_ref, out_ref):
    x = x_ref[...]

    # ---- fused pi+vf trunk: 3 matmuls total ----
    h = jnp.tanh(jnp.dot(x, w1_ref[...], preferred_element_type=jnp.float32)
                 + b1_ref[...])
    h = jnp.tanh(jnp.dot(h, w2_ref[...], preferred_element_type=jnp.float32)
                 + b2_ref[...])
    y3 = (jnp.dot(h, w3_ref[...], preferred_element_type=jnp.float32)
          + b3_ref[...])                               # (tb, out_dim + 1)

    # Packed distribution constants (precomputed in prepare_params):
    #   row 0: action_scale, 1: action_bias, 2: std_eff, 3: 1/(2*std^2),
    #   row 4: logp_const (= sum(log std) + out_dim*0.5*log(2*pi)), broadcast.
    dc = dc_ref[...]                                   # (5, out_dim)
    scale = dc[0:1, :]
    bias = dc[1:2, :]
    inv2var = dc[3:4, :]
    logp_const = dc[4:5, 0:1]

    mean = jnp.tanh(y3[:, :out_dim]) * scale + bias
    value = y3[:, out_dim:out_dim + 1]                 # vf head: no activation

    # a = rsample() = mean + std * eps  (or the externally supplied action)
    if given_a:
        a = aeps_ref[...]
    else:
        a = mean + dc[2:3, :] * aeps_ref[...]

    # Normal(mean, std).log_prob(a).sum(1)
    diff = a - mean
    logp = -jnp.sum(diff * diff * inv2var, axis=1, keepdims=True) - logp_const

    # One lane-dense output block: rows = [a_0..a_{out-1} | logp | value].
    out_ref[...] = jnp.concatenate([a, logp, value], axis=1).T


def prepare_params(params):
    """One-time parameter fusion / preprocessing.

    Call once and reuse the result across forward calls (this is the piece
    that was previously rebuilt inside every forward).
    """
    f32 = jnp.float32
    w1, b1 = params["w1"], params["b1"]
    w2, b2 = params["w2"], params["b2"]
    w3, b3 = params["w3"], params["b3"]
    v1, c1 = params["v1"], params["c1"]
    v2, c2 = params["v2"], params["c2"]
    v3, c3 = params["v3"], params["c3"]
    H1, H2 = w1.shape[1], w2.shape[1]
    out_dim = w3.shape[1]

    # Fused layer 1: (D, 2*H1)
    w1f = jnp.concatenate([w1, v1], axis=1).astype(f32)
    b1f = jnp.concatenate([jnp.reshape(b1, (1, -1)),
                           jnp.reshape(c1, (1, -1))], axis=1).astype(f32)
    # Fused layer 2: block-diagonal (2*H1, 2*H2)
    w2f = jnp.concatenate([
        jnp.concatenate([w2, jnp.zeros((H1, H2), f32)], axis=1),
        jnp.concatenate([jnp.zeros((H1, H2), f32), v2], axis=1),
    ], axis=0).astype(f32)
    b2f = jnp.concatenate([jnp.reshape(b2, (1, -1)),
                           jnp.reshape(c2, (1, -1))], axis=1).astype(f32)
    # Fused layer 3: block-diagonal (2*H2, out_dim + 1) -> [mean_pre | value]
    w3f = jnp.concatenate([
        jnp.concatenate([w3, jnp.zeros((H2, 1), f32)], axis=1),
        jnp.concatenate([jnp.zeros((H2, out_dim), f32), v3], axis=1),
    ], axis=0).astype(f32)
    b3f = jnp.concatenate([jnp.reshape(b3, (1, -1)),
                           jnp.reshape(c3, (1, -1))], axis=1).astype(f32)

    scale = jnp.asarray(params["action_scale"], f32).reshape(-1)
    bias = jnp.asarray(params["action_bias"], f32).reshape(-1)
    log_std = jnp.clip(jnp.asarray(params["log_std"], f32).reshape(-1),
                       LOG_STD_MIN, LOG_STD_MAX)
    std_eff = jnp.exp(log_std) * scale
    inv2var = 1.0 / (2.0 * std_eff * std_eff)
    log_std_eff_sum = jnp.sum(jnp.log(std_eff))
    logp_const = log_std_eff_sum + out_dim * HALF_LOG_2PI
    ent_sum = out_dim * (0.5 + HALF_LOG_2PI) + log_std_eff_sum

    dconsts = jnp.stack([scale, bias, std_eff, inv2var,
                         jnp.broadcast_to(logp_const, (out_dim,))],
                        axis=0).astype(f32)            # (5, out_dim)

    return dict(w1f=w1f, b1f=b1f, w2f=w2f, b2f=b2f, w3f=w3f, b3f=b3f,
                dconsts=dconsts, ent_sum=ent_sum,
                out_dim=out_dim, input_dim=w1.shape[0])


def _pick_tb(B, tb):
    # Full batch in one tile when it fits (single grid step, no per-step
    # overhead; best for the 1-TC chips).  When tiling, keep tb a multiple of
    # 128 so x / eps sublane dims and the lane-dense output stay aligned.
    if tb >= B:
        return B
    return max(128, (tb // 128) * 128)


def actor_critic_forward(prepped, x, aeps, given_a=False, tb=2048):
    """ActorCriticGaussianPolicy.forward.

    Returns (a[B, out], log_prob_sum[B], entropy_sum[B], value[B, 1]).
    `aeps` is either N(0,1) noise (given_a=False) or a concrete action
    (given_a=True), shape (B, output_dim).
    """
    f32 = jnp.float32
    B, D = x.shape
    out_dim = prepped["out_dim"]

    tb = _pick_tb(B, tb)
    grid = (pl.cdiv(B, tb),)

    # Constant index_map -> block never changes across grid steps, so weights
    # and constants stay resident in VMEM (fetched once, not per step).
    def full(arr):
        return pl.BlockSpec(arr.shape, lambda i: (0,) * arr.ndim)

    in_specs = [
        pl.BlockSpec((tb, D), lambda i: (i, 0)),        # x
        pl.BlockSpec((tb, out_dim), lambda i: (i, 0)),  # eps / given action
        full(prepped["w1f"]), full(prepped["b1f"]),
        full(prepped["w2f"]), full(prepped["b2f"]),
        full(prepped["w3f"]), full(prepped["b3f"]),
        full(prepped["dconsts"]),
    ]
    # Lane-dense packed output: (out_dim + 2, B) = rows [a.T | logp | value].
    out_specs = pl.BlockSpec((out_dim + 2, tb), lambda i: (0, i))
    out_shape = jax.ShapeDtypeStruct((out_dim + 2, B), f32)

    packed = pl.pallas_call(
        functools.partial(_ac_kernel, given_a, out_dim),
        grid=grid,
        in_specs=in_specs,
        out_specs=out_specs,
        out_shape=out_shape,
        compiler_params=pltpu.CompilerParams(
            dimension_semantics=("parallel",),
            vmem_limit_bytes=32 * 1024 * 1024),
    )(
        x.astype(f32), aeps.astype(f32),
        prepped["w1f"], prepped["b1f"],
        prepped["w2f"], prepped["b2f"],
        prepped["w3f"], prepped["b3f"],
        prepped["dconsts"],
    )

    a = packed[:out_dim, :].T
    logp = packed[out_dim, :]
    value = packed[out_dim + 1, :].reshape(B, 1)
    # Entropy of a fixed-std Gaussian is a per-call constant -> no kernel work.
    ent = jnp.broadcast_to(jnp.asarray(prepped["ent_sum"], f32), (B,))
    return a, logp, ent, value


def _ref_forward(params, x, aeps, given_a=False):
    """Pure-JAX reference mirroring the PyTorch module."""
    h = jnp.tanh(x @ params["w1"] + params["b1"])
    h = jnp.tanh(h @ params["w2"] + params["b2"])
    mean = jnp.tanh(h @ params["w3"] + params["b3"])
    mean = mean * params["action_scale"] + params["action_bias"]
    log_std = jnp.clip(params["log_std"], LOG_STD_MIN, LOG_STD_MAX)
    std = jnp.exp(log_std) * params["action_scale"]
    a = aeps if given_a else mean + std * aeps
    logp = (-((a - mean) ** 2) / (2.0 * std * std)
            - jnp.log(std) - HALF_LOG_2PI).sum(axis=1)
    ent = jnp.broadcast_to(0.5 + HALF_LOG_2PI + jnp.log(std), a.shape).sum(axis=1)
    hv = jnp.tanh(x @ params["v1"] + params["c1"])
    hv = jnp.tanh(hv @ params["v2"] + params["c2"])
    val = hv @ params["v3"] + params["c3"]
    return a, logp, ent, val


def _linear_init(key, fan_in, fan_out):
    # Deterministic PyTorch-style U(-1/sqrt(fan_in), 1/sqrt(fan_in)) init.
    kw, kb = jax.random.split(key)
    bound = 1.0 / np.sqrt(fan_in)
    w = jax.random.uniform(kw, (fan_in, fan_out), jnp.float32, -bound, bound)
    b = jax.random.uniform(kb, (1, fan_out), jnp.float32, -bound, bound)
    return w, b


if __name__ == "__main__":
    key = jax.random.PRNGKey(0)
    B, input_dim, out_dim = 8, 16, 4
    h1, h2 = 32, 32

    keys = jax.random.split(key, 8)
    w1, b1 = _linear_init(keys[0], input_dim, h1)
    w2, b2 = _linear_init(keys[1], h1, h2)
    w3, b3 = _linear_init(keys[2], h2, out_dim)
    v1, c1 = _linear_init(keys[3], input_dim, h1)
    v2, c2 = _linear_init(keys[4], h1, h2)
    v3, c3 = _linear_init(keys[5], h2, 1)

    action_high = jnp.full((out_dim,), 2.0, jnp.float32)
    action_low = jnp.full((out_dim,), -1.0, jnp.float32)

    params = dict(
        w1=w1, b1=b1, w2=w2, b2=b2, w3=w3, b3=b3,
        v1=v1, c1=c1, v2=v2, c2=c2, v3=v3, c3=c3,
        log_std=jnp.full((1, out_dim), LOG_STD_INIT, jnp.float32),
        action_scale=((action_high - action_low) / 2.0).reshape(1, out_dim),
        action_bias=((action_high + action_low) / 2.0).reshape(1, out_dim),
    )

    x = jax.random.normal(keys[6], (B, input_dim), jnp.float32)
    eps = jax.random.normal(keys[7], (B, out_dim), jnp.float32)

    # One-time parameter fusion, cached across calls.
    prepped = jax.tree_util.tree_map(lambda t: t, prepare_params(params))

    # a sampled path (given_a=False): rsample noise eps drawn outside the
    # kernel with jax.random (no in-kernel PRNG needed).
    outs = actor_critic_forward(prepped, x, eps, given_a=False)
    outs = jax.block_until_ready(outs)

    refs = _ref_forward(params, x, eps, given_a=False)
    for got, want in zip(outs, refs):
        np.testing.assert_allclose(np.asarray(got), np.asarray(want),
                                   rtol=1e-5, atol=1e-5)

    # Also check the "action provided" path (forward(x, a)).
    a_given = jnp.asarray(np.asarray(refs[0]))
    outs_g = jax.block_until_ready(
        actor_critic_forward(prepped, x, a_given, given_a=True))
    refs_g = _ref_forward(params, x, a_given, given_a=True)
    for got, want in zip(outs_g, refs_g):
        np.testing.assert_allclose(np.asarray(got), np.asarray(want),
                                   rtol=1e-5, atol=1e-5)

    print("KERNEL_OK")
</pallas_src>

<mosaic_0001>
module attributes {stable_mosaic.version = 11 : i64} {
  func.func @_ac_kernel(%arg0: i32, %arg1: memref<8x16xf32, #tpu.memory_space<vmem>>, %arg2: memref<8x4xf32, #tpu.memory_space<vmem>>, %arg3: memref<16x64xf32, #tpu.memory_space<vmem>>, %arg4: memref<1x64xf32, #tpu.memory_space<vmem>>, %arg5: memref<64x64xf32, #tpu.memory_space<vmem>>, %arg6: memref<1x64xf32, #tpu.memory_space<vmem>>, %arg7: memref<64x5xf32, #tpu.memory_space<vmem>>, %arg8: memref<1x5xf32, #tpu.memory_space<vmem>>, %arg9: memref<5x4xf32, #tpu.memory_space<vmem>>, %arg10: memref<6x8xf32, #tpu.memory_space<vmem>>) attributes {dimension_semantics = [#tpu.dimension_semantics<parallel>], iteration_bounds = array<i64: 1>, scalar_prefetch = 0 : i64, scratch_operands = 0 : i64, tpu.core_type = #tpu.core_type<tc>, window_params = [{transform_indices = @transform_0, window_bounds = array<i64: 8, 16>}, {transform_indices = @transform_1, window_bounds = array<i64: 8, 4>}, {pipeline_mode = #tpu.pipeline_mode<synchronous>, transform_indices = @transform_2, window_bounds = array<i64: 16, 64>}, {pipeline_mode = #tpu.pipeline_mode<synchronous>, transform_indices = @transform_3, window_bounds = array<i64: 1, 64>}, {pipeline_mode = #tpu.pipeline_mode<synchronous>, transform_indices = @transform_4, window_bounds = array<i64: 64, 64>}, {pipeline_mode = #tpu.pipeline_mode<synchronous>, transform_indices = @transform_5, window_bounds = array<i64: 1, 64>}, {pipeline_mode = #tpu.pipeline_mode<synchronous>, transform_indices = @transform_6, window_bounds = array<i64: 64, 5>}, {pipeline_mode = #tpu.pipeline_mode<synchronous>, transform_indices = @transform_7, window_bounds = array<i64: 1, 5>}, {pipeline_mode = #tpu.pipeline_mode<synchronous>, transform_indices = @transform_8, window_bounds = array<i64: 5, 4>}, {transform_indices = @transform_9, window_bounds = array<i64: 6, 8>}]} {
    %c0 = arith.constant 0 : index
    %c0_0 = arith.constant 0 : index
    %0 = vector.load %arg1[%c0, %c0_0] : memref<8x16xf32, #tpu.memory_space<vmem>>, vector<8x16xf32>
    %c0_1 = arith.constant 0 : index
    %c0_2 = arith.constant 0 : index
    %1 = vector.load %arg3[%c0_1, %c0_2] : memref<16x64xf32, #tpu.memory_space<vmem>>, vector<16x64xf32>
    %cst = arith.constant dense<0.000000e+00> : vector<8x64xf32>
    %2 = tpu.matmul %0, %1, %cst {dimension_numbers = #tpu.dot_dimension_numbers<[1], [0], [0], [1], [0, 0, 1, 1], [], []>} : vector<8x16xf32>, vector<16x64xf32>, vector<8x64xf32> -> vector<8x64xf32>
    %c0_3 = arith.constant 0 : index
    %c0_4 = arith.constant 0 : index
    %3 = vector.load %arg4[%c0_3, %c0_4] : memref<1x64xf32, #tpu.memory_space<vmem>>, vector<1x64xf32>
    %4 = vector.broadcast %3 : vector<1x64xf32> to vector<8x64xf32>
    %5 = arith.addf %2, %4 : vector<8x64xf32>
    %6 = math.tanh %5 : vector<8x64xf32>
    %c0_5 = arith.constant 0 : index
    %c0_6 = arith.constant 0 : index
    %7 = vector.load %arg5[%c0_5, %c0_6] : memref<64x64xf32, #tpu.memory_space<vmem>>, vector<64x64xf32>
    %cst_7 = arith.constant dense<0.000000e+00> : vector<8x64xf32>
    %8 = tpu.matmul %6, %7, %cst_7 {dimension_numbers = #tpu.dot_dimension_numbers<[1], [0], [0], [1], [0, 0, 1, 1], [], []>} : vector<8x64xf32>, vector<64x64xf32>, vector<8x64xf32> -> vector<8x64xf32>
    %c0_8 = arith.constant 0 : index
    %c0_9 = arith.constant 0 : index
    %9 = vector.load %arg6[%c0_8, %c0_9] : memref<1x64xf32, #tpu.memory_space<vmem>>, vector<1x64xf32>
    %10 = vector.broadcast %9 : vector<1x64xf32> to vector<8x64xf32>
    %11 = arith.addf %8, %10 : vector<8x64xf32>
    %12 = math.tanh %11 : vector<8x64xf32>
    %c0_10 = arith.constant 0 : index
    %c0_11 = arith.constant 0 : index
    %13 = vector.load %arg7[%c0_10, %c0_11] : memref<64x5xf32, #tpu.memory_space<vmem>>, vector<64x5xf32>
    %cst_12 = arith.constant dense<0.000000e+00> : vector<8x5xf32>
    %14 = tpu.matmul %12, %13, %cst_12 {dimension_numbers = #tpu.dot_dimension_numbers<[1], [0], [0], [1], [0, 0, 1, 1], [], []>} : vector<8x64xf32>, vector<64x5xf32>, vector<8x5xf32> -> vector<8x5xf32>
    %c0_13 = arith.constant 0 : index
    %c0_14 = arith.constant 0 : index
    %15 = vector.load %arg8[%c0_13, %c0_14] : memref<1x5xf32, #tpu.memory_space<vmem>>, vector<1x5xf32>
    %16 = vector.broadcast %15 : vector<1x5xf32> to vector<8x5xf32>
    %17 = arith.addf %14, %16 : vector<8x5xf32>
    %c0_15 = arith.constant 0 : index
    %c0_16 = arith.constant 0 : index
    %18 = vector.load %arg9[%c0_15, %c0_16] : memref<5x4xf32, #tpu.memory_space<vmem>>, vector<5x4xf32>
    %19 = vector.extract_strided_slice %18 {offsets = [0, 0], sizes = [1, 4], strides = [1, 1]} : vector<5x4xf32> to vector<1x4xf32>
    %20 = vector.extract_strided_slice %18 {offsets = [1, 0], sizes = [1, 4], strides = [1, 1]} : vector<5x4xf32> to vector<1x4xf32>
    %21 = vector.extract_strided_slice %18 {offsets = [3, 0], sizes = [1, 4], strides = [1, 1]} : vector<5x4xf32> to vector<1x4xf32>
    %22 = vector.extract_strided_slice %18 {offsets = [4, 0], sizes = [1, 1], strides = [1, 1]} : vector<5x4xf32> to vector<1x1xf32>
    %23 = vector.extract_strided_slice %17 {offsets = [0, 0], sizes = [8, 4], strides = [1, 1]} : vector<8x5xf32> to vector<8x4xf32>
    %24 = math.tanh %23 : vector<8x4xf32>
    %25 = vector.broadcast %19 : vector<1x4xf32> to vector<8x4xf32>
    %26 = arith.mulf %24, %25 : vector<8x4xf32>
    %27 = vector.broadcast %20 : vector<1x4xf32> to vector<8x4xf32>
    %28 = arith.addf %26, %27 : vector<8x4xf32>
    %29 = vector.extract_strided_slice %17 {offsets = [0, 4], sizes = [8, 1], strides = [1, 1]} : vector<8x5xf32> to vector<8x1xf32>
    %30 = vector.extract_strided_slice %18 {offsets = [2, 0], sizes = [1, 4], strides = [1, 1]} : vector<5x4xf32> to vector<1x4xf32>
    %c0_17 = arith.constant 0 : index
    %c0_18 = arith.constant 0 : index
    %31 = vector.load %arg2[%c0_17, %c0_18] : memref<8x4xf32, #tpu.memory_space<vmem>>, vector<8x4xf32>
    %32 = vector.broadcast %30 : vector<1x4xf32> to vector<8x4xf32>
    %33 = arith.mulf %32, %31 : vector<8x4xf32>
    %34 = arith.addf %28, %33 : vector<8x4xf32>
    %35 = arith.subf %34, %28 : vector<8x4xf32>
    %36 = arith.mulf %35, %35 : vector<8x4xf32>
    %37 = vector.broadcast %21 : vector<1x4xf32> to vector<8x4xf32>
    %38 = arith.mulf %36, %37 : vector<8x4xf32>
    %cst_19 = arith.constant dense<0.000000e+00> : vector<8xf32>
    %39 = vector.multi_reduction <add>, %38, %cst_19 [1] : vector<8x4xf32> to vector<8xf32>
    %40 = vector.shape_cast %39 : vector<8xf32> to vector<8x1xf32>
    %cst_20 = arith.constant 0.000000e+00 : f32
    %41 = vector.broadcast %cst_20 : f32 to vector<8x1xf32>
    %42 = arith.subf %41, %40 : vector<8x1xf32>
    %43 = vector.broadcast %22 : vector<1x1xf32> to vector<8x1xf32>
    %44 = arith.subf %42, %43 : vector<8x1xf32>
    %45 = tpu.concatenate %34, %44, %29 in 1 : vector<8x4xf32>, vector<8x1xf32>, vector<8x1xf32> -> vector<8x6xf32>
    %46 = tpu.transpose %45, [1, 0] : vector<8x6xf32> -> vector<6x8xf32>
    %c0_21 = arith.constant 0 : index
    %c0_22 = arith.constant 0 : index
    %47 = vector.load %arg10[%c0_21, %c0_22] : memref<6x8xf32, #tpu.memory_space<vmem>>, vector<6x8xf32>
    tpu.vector_store %arg10[%c0_21, %c0_22], %46 {strides = array<i32>} : memref<6x8xf32, #tpu.memory_space<vmem>>, vector<6x8xf32>,
    return
  }
  func.func @transform_0(%arg0: i32) -> (i32, i32) {
    %c0_i32 = arith.constant 0 : i32
    %c0_i32_0 = arith.constant 0 : i32
    return %arg0, %c0_i32 : i32, i32
  }
  func.func @transform_1(%arg0: i32) -> (i32, i32) {
    %c0_i32 = arith.constant 0 : i32
    %c0_i32_0 = arith.constant 0 : i32
    return %arg0, %c0_i32 : i32, i32
  }
  func.func @transform_2(%arg0: i32) -> (i32, i32) {
    %c0_i32 = arith.constant 0 : i32
    %c0_i32_0 = arith.constant 0 : i32
    %c0_i32_1 = arith.constant 0 : i32
    return %c0_i32, %c0_i32_0 : i32, i32
  }
  func.func @transform_3(%arg0: i32) -> (i32, i32) {
    %c0_i32 = arith.constant 0 : i32
    %c0_i32_0 = arith.constant 0 : i32
    %c0_i32_1 = arith.constant 0 : i32
    return %c0_i32, %c0_i32_0 : i32, i32
  }
  func.func @transform_4(%arg0: i32) -> (i32, i32) {
    %c0_i32 = arith.constant 0 : i32
    %c0_i32_0 = arith.constant 0 : i32
    %c0_i32_1 = arith.constant 0 : i32
    return %c0_i32, %c0_i32_0 : i32, i32
  }
  func.func @transform_5(%arg0: i32) -> (i32, i32) {
    %c0_i32 = arith.constant 0 : i32
    %c0_i32_0 = arith.constant 0 : i32
    %c0_i32_1 = arith.constant 0 : i32
    return %c0_i32, %c0_i32_0 : i32, i32
  }
  func.func @transform_6(%arg0: i32) -> (i32, i32) {
    %c0_i32 = arith.constant 0 : i32
    %c0_i32_0 = arith.constant 0 : i32
    %c0_i32_1 = arith.constant 0 : i32
    return %c0_i32, %c0_i32_0 : i32, i32
  }
  func.func @transform_7(%arg0: i32) -> (i32, i32) {
    %c0_i32 = arith.constant 0 : i32
    %c0_i32_0 = arith.constant 0 : i32
    %c0_i32_1 = arith.constant 0 : i32
    return %c0_i32, %c0_i32_0 : i32, i32
  }
  func.func @transform_8(%arg0: i32) -> (i32, i32) {
    %c0_i32 = arith.constant 0 : i32
    %c0_i32_0 = arith.constant 0 : i32
    %c0_i32_1 = arith.constant 0 : i32
    return %c0_i32, %c0_i32_0 : i32, i32
  }
  func.func @transform_9(%arg0: i32) -> (i32, i32) {
    %c0_i32 = arith.constant 0 : i32
    %c0_i32_0 = arith.constant 0 : i32
    return %c0_i32, %arg0 : i32, i32
  }
}

</mosaic_0001>

<llo_original>
// kernel: tpu_custom_call.1
$region0: #{tpu_custom_call.1}
  #allocation0 [shape = 'u32[]', space=smem, size = 0x4, offset = 0x4, fixed_abs, tag = 'smem constant byte address 0x4 - core index']
  #allocation1 [shape = 'u32[144,128]{1,0:T(1,128)}', space=vmem, size = 0x12000, scoped, tag = 'internal scratch']
  %s0 = inlined_call_operand.vmem [shape: f32[8,16], index: 0, kind: input, shape index: {}]
  %s1 = inlined_call_operand.vmem [shape: f32[8,4], index: 1, kind: input, shape index: {}]
  %s2 = inlined_call_operand.vmem [shape: f32[16,64], index: 2, kind: input, shape index: {}]
  %s3 = inlined_call_operand.vmem [shape: f32[1,64], index: 3, kind: input, shape index: {}]
  %s4 = inlined_call_operand.vmem [shape: f32[64,64], index: 4, kind: input, shape index: {}]
  %s5 = inlined_call_operand.vmem [shape: f32[1,64], index: 5, kind: input, shape index: {}]
  %s6 = inlined_call_operand.vmem [shape: f32[64,5], index: 6, kind: input, shape index: {}]
  %s7 = inlined_call_operand.vmem [shape: f32[1,5], index: 7, kind: input, shape index: {}]
  %s8 = inlined_call_operand.vmem [shape: f32[5,4], index: 8, kind: input, shape index: {}]
  %s9 = inlined_call_operand.hbm [shape: f32[6,8], index: 9, kind: output, shape index: {}]
  %s10 = sld [smem:[#allocation0]]
  $region46: #{tpu_custom_call.1} parent=0
    _
  %s12 = ssub.s32 1, %s10
  %s13 = scalar_select 0, %s12, %s10
  $region1: #{tpu_custom_call.1} parent=0
    #allocation2 [shape = 'u8[4096]{0}', space=vmem, size = 0x1000, scoped, tag = 'output window, operand 0, single buffered']
    #allocation3 [shape = 's32[1]{0}', space=sflag, size = 0x4, scoped, tag = 'scoped memory for tpu_custom_call.1']
    %14 = vsyncpa [#allocation3], 0
    // Predicated region
    $region2: #{tpu_custom_call.1} parent=1 // pred_check
      _
    $region3: #{tpu_custom_call.1} parent=1 // pred_check_branch
      %16 = sbr.rel (0) target = $region5
    $region4: #{tpu_custom_call.1} parent=1 // pred_region
      _
    $region5: #{tpu_custom_call.1} parent=1 // pred_fallthru
      _
    // Predicated region
    $region6: #{tpu_custom_call.1} parent=1 // pred_check
      _
    $region7: #{tpu_custom_call.1} parent=1 // pred_check_branch
      %18 = sbr.rel (0) target = $region9
    $region8: #{tpu_custom_call.1} parent=1 // pred_region
      _
    $region9: #{tpu_custom_call.1} parent=1 // pred_fallthru
      _
    // Predicated region
    $region10: #{tpu_custom_call.1} parent=1 // pred_check
      _
    $region11: #{tpu_custom_call.1} parent=1 // pred_check_branch
      %20 = sbr.rel (0) target = $region13
    $region12: #{tpu_custom_call.1} parent=1 // pred_region
      _
    $region13: #{tpu_custom_call.1} parent=1 // pred_fallthru
      _
    // Predicated region
    $region14: #{tpu_custom_call.1} parent=1 // pred_check
      _
    $region15: #{tpu_custom_call.1} parent=1 // pred_check_branch
      %22 = sbr.rel (0) target = $region17
    $region16: #{tpu_custom_call.1} parent=1 // pred_region
      _
    $region17: #{tpu_custom_call.1} parent=1 // pred_fallthru
      _
    // Predicated region
    $region18: #{tpu_custom_call.1} parent=1 // pred_check
      _
    $region19: #{tpu_custom_call.1} parent=1 // pred_check_branch
      %24 = sbr.rel (0) target = $region21
    $region20: #{tpu_custom_call.1} parent=1 // pred_region
      _
    $region21: #{tpu_custom_call.1} parent=1 // pred_fallthru
      _
    // Predicated region
    $region22: #{tpu_custom_call.1} parent=1 // pred_check
      _
    $region23: #{tpu_custom_call.1} parent=1 // pred_check_branch
      %26 = sbr.rel (0) target = $region25
    $region24: #{tpu_custom_call.1} parent=1 // pred_region
      _
    $region25: #{tpu_custom_call.1} parent=1 // pred_fallthru
      _
    // Predicated region
    $region26: #{tpu_custom_call.1} parent=1 // pred_check
      _
    $region27: #{tpu_custom_call.1} parent=1 // pred_check_branch
      %28 = sbr.rel (0) target = $region29
    $region28: #{tpu_custom_call.1} parent=1 // pred_region
      _
    $region29: #{tpu_custom_call.1} parent=1 // pred_fallthru
      _
    // Predicated region
    $region30: #{tpu_custom_call.1} parent=1 // pred_check
      _
    $region31: #{tpu_custom_call.1} parent=1 // pred_check_branch
      %30 = sbr.rel (0) target = $region33
    $region32: #{tpu_custom_call.1} parent=1 // pred_region
      _
    $region33: #{tpu_custom_call.1} parent=1 // pred_fallthru
      _
    // Predicated region
    $region34: #{tpu_custom_call.1} parent=1 // pred_check
      _
    $region35: #{tpu_custom_call.1} parent=1 // pred_check_branch
      %32 = sbr.rel (0) target = $region37
    $region36: #{tpu_custom_call.1} parent=1 // pred_region
      _
    $region37: #{tpu_custom_call.1} parent=1 // pred_fallthru
      _
    %v33 = vld [vmem:[%s0] sm:$0xff]
    %v34 = vld [vmem:[%s2] sm:$0xff]
    %v35 = vld [vmem:[%s2 + $0x8] sm:$0xff]
    %v36 = vld [vmem:[%s3] sm:$0x1]
    %v38 = vlaneseq
    %v39 = vshrl.u32 %v38, 7
    %v40 = vsub.s32 0, %v39
    %v41 = vrot.slane %v36, %v40
    %vm43 = vcmask 130048
    %v45 = vsel %vm43, %v33, 0
    %47 = vmatprep.subr.mxu0 0.0
    %48 = vmatpush1.msra.mxu0 %v34
    %49 = vmatprep.subr.mxu0 0.0
    %50 = vmatpush1.msra.mxu0 %v35
    %51 = vmatprep.subr.mxu0 0.0
    %52 = vmatpush1.msra.mxu0 0.0
    %53 = vmatprep.subr.mxu0 0.0
    %54 = vmatpush1.msra.mxu0 0.0
    %55 = vmatprep.subr.mxu0 0.0
    %56 = vmatpush1.msra.mxu0 0.0
    %57 = vmatprep.subr.mxu0 0.0
    %58 = vmatpush1.msra.mxu0 0.0
    %59 = vmatprep.subr.mxu0 0.0
    %60 = vmatpush1.msra.mxu0 0.0
    %61 = vmatprep.subr.mxu0 0.0
    %62 = vmatpush1.msra.mxu0 0.0
    %63 = vmatprep.subr.mxu0 0.0
    %64 = vmatpush1.msra.mxu0 0.0
    %65 = vmatprep.subr.mxu0 0.0
    %66 = vmatpush1.msra.mxu0 0.0
    %67 = vmatprep.subr.mxu0 0.0
    %68 = vmatpush1.msra.mxu0 0.0
    %69 = vmatprep.subr.mxu0 0.0
    %70 = vmatpush1.msra.mxu0 0.0
    %71 = vmatprep.subr.mxu0 0.0
    %72 = vmatpush1.msra.mxu0 0.0
    %73 = vmatprep.subr.mxu0 0.0
    %74 = vmatpush1.msra.mxu0 0.0
    %75 = vmatprep.subr.mxu0 0.0
    %76 = vmatpush1.msra.mxu0 0.0
    %77 = vmatprep.subr.mxu0 0.0
    %78 = vmatpush1.msra.mxu0 0.0
    %79 = vmatprep.subr.mxu0 0.0
    %80 = vmatpush1.msra.mxu0 0.0
    %81 = vmatprep.subr.mxu0 0.0
    %82 = vmatpush1.msra.mxu0 0.0
    %83 = vmatprep.subr.mxu0 0.0
    %84 = vmatpush1.msra.mxu0 0.0
    %85 = vmatprep.subr.mxu0 0.0
    %86 = vmatpush1.msra.mxu0 0.0
    %87 = vmatprep.subr.mxu0 0.0
    %88 = vmatpush1.msra.mxu0 0.0
    %89 = vmatprep.subr.mxu0 0.0
    %90 = vmatpush1.msra.mxu0 0.0
    %91 = vmatprep.subr.mxu0 0.0
    %92 = vmatpush1.msra.mxu0 0.0
    %93 = vmatprep.subr.mxu0 0.0
    %94 = vmatpush1.msra.mxu0 0.0
    %95 = vmatprep.subr.mxu0 0.0
    %96 = vmatpush1.msra.mxu0 0.0
    %97 = vmatprep.subr.mxu0 0.0
    %98 = vmatpush1.msra.mxu0 0.0
    %99 = vmatprep.subr.mxu0 0.0
    %100 = vmatpush1.msra.mxu0 0.0
    %101 = vmatprep.subr.mxu0 0.0
    %102 = vmatpush1.msra.mxu0 0.0
    %103 = vmatprep.subr.mxu0 0.0
    %104 = vmatpush1.msra.mxu0 0.0
    %105 = vmatprep.subr.mxu0 0.0
    %106 = vmatpush1.msra.mxu0 0.0
    %107 = vmatprep.subr.mxu0 0.0
    %108 = vmatpush1.msra.mxu0 0.0
    %109 = vmatprep.subr.mxu0 0.0
    %110 = vmatpush1.msra.mxu0 0.0
    %111 = vmatprep.mubr.f32.mxu0 0.0
    %112 = vmatmul.mubr.f32.gmra.mrb[0].mxu0 %v45
    %v113 = vpop.f32.mrb[0].mxu0
    %v114 = vadd.f32 %v41, %v113
    %v115 = vpop.f32.mrb[0].mxu0
    %116 = vdwg.mxu0
    %v117 = vtanh.pop %v114
    %v118 = vld [vmem:[%s4] sm:$0xff]
    %v119 = vld [vmem:[%s4 + $0x8] sm:$0xff]
    %v120 = vld [vmem:[%s4 + $0x10] sm:$0xff]
    %v121 = vld [vmem:[%s4 + $0x18] sm:$0xff]
    %v122 = vld [vmem:[%s4 + $0x20] sm:$0xff]
    %v123 = vld [vmem:[%s4 + $0x28] sm:$0xff]
    %v124 = vld [vmem:[%s4 + $0x30] sm:$0xff]
    %v125 = vld [vmem:[%s4 + $0x38] sm:$0xff]
    %v126 = vld [vmem:[%s5] sm:$0x1]
    %v128 = vlaneseq
    %v129 = vshrl.u32 %v128, 7
    %v130 = vsub.s32 0, %v129
    %v131 = vrot.slane %v126, %v130
    %vm133 = vcmask 523264
    %v135 = vsel %vm133, %v117, 0
    %137 = vmatprep.subr.mxu0 0.0
    %138 = vmatpush1.msra.mxu0 %v118
    %139 = vmatprep.subr.mxu0 0.0
    %140 = vmatpush1.msra.mxu0 %v119
    %141 = vmatprep.subr.mxu0 0.0
    %142 = vmatpush1.msra.mxu0 %v120
    %143 = vmatprep.subr.mxu0 0.0
    %144 = vmatpush1.msra.mxu0 %v121
    %145 = vmatprep.subr.mxu0 0.0
    %146 = vmatpush1.msra.mxu0 %v122
    %147 = vmatprep.subr.mxu0 0.0
    %148 = vmatpush1.msra.mxu0 %v123
    %149 = vmatprep.subr.mxu0 0.0
    %150 = vmatpush1.msra.mxu0 %v124
    %151 = vmatprep.subr.mxu0 0.0
    %152 = vmatpush1.msra.mxu0 %v125
    %153 = vmatprep.subr.mxu0 0.0
    %154 = vmatpush1.msra.mxu0 0.0
    %155 = vmatprep.subr.mxu0 0.0
    %156 = vmatpush1.msra.mxu0 0.0
    %157 = vmatprep.subr.mxu0 0.0
    %158 = vmatpush1.msra.mxu0 0.0
    %159 = vmatprep.subr.mxu0 0.0
    %160 = vmatpush1.msra.mxu0 0.0
    %161 = vmatprep.subr.mxu0 0.0
    %162 = vmatpush1.msra.mxu0 0.0
    %163 = vmatprep.subr.mxu0 0.0
    %164 = vmatpush1.msra.mxu0 0.0
    %165 = vmatprep.subr.mxu0 0.0
    %166 = vmatpush1.msra.mxu0 0.0
    %167 = vmatprep.subr.mxu0 0.0
    %168 = vmatpush1.msra.mxu0 0.0
    %169 = vmatprep.subr.mxu0 0.0
    %170 = vmatpush1.msra.mxu0 0.0
    %171 = vmatprep.subr.mxu0 0.0
    %172 = vmatpush1.msra.mxu0 0.0
    %173 = vmatprep.subr.mxu0 0.0
    %174 = vmatpush1.msra.mxu0 0.0
    %175 = vmatprep.subr.mxu0 0.0
    %176 = vmatpush1.msra.mxu0 0.0
    %177 = vmatprep.subr.mxu0 0.0
    %178 = vmatpush1.msra.mxu0 0.0
    %179 = vmatprep.subr.mxu0 0.0
    %180 = vmatpush1.msra.mxu0 0.0
    %181 = vmatprep.subr.mxu0 0.0
    %182 = vmatpush1.msra.mxu0 0.0
    %183 = vmatprep.subr.mxu0 0.0
    %184 = vmatpush1.msra.mxu0 0.0
    %185 = vmatprep.subr.mxu0 0.0
    %186 = vmatpush1.msra.mxu0 0.0
    %187 = vmatprep.subr.mxu0 0.0
    %188 = vmatpush1.msra.mxu0 0.0
    %189 = vmatprep.subr.mxu0 0.0
    %190 = vmatpush1.msra.mxu0 0.0
    %191 = vmatprep.subr.mxu0 0.0
    %192 = vmatpush1.msra.mxu0 0.0
    %193 = vmatprep.subr.mxu0 0.0
    %194 = vmatpush1.msra.mxu0 0.0
    %195 = vmatprep.subr.mxu0 0.0
    %196 = vmatpush1.msra.mxu0 0.0
    %197 = vmatprep.subr.mxu0 0.0
    %198 = vmatpush1.msra.mxu0 0.0
    %199 = vmatprep.subr.mxu0 0.0
    %200 = vmatpush1.msra.mxu0 0.0
    %201 = vmatprep.mubr.f32.mxu0 0.0
    %202 = vmatmul.mubr.f32.gmra.mrb[0].mxu0 %v135
    %v203 = vpop.f32.mrb[0].mxu0
    %v204 = vadd.f32 %v131, %v203
    %v205 = vpop.f32.mrb[0].mxu0
    %206 = vdwg.mxu0
    %v207 = vtanh.pop %v204
    %v208 = vld [vmem:[%s6] sm:$0xff]
    %v209 = vld [vmem:[%s6 + $0x8] sm:$0xff]
    %v210 = vld [vmem:[%s6 + $0x10] sm:$0xff]
    %v211 = vld [vmem:[%s6 + $0x18] sm:$0xff]
    %v212 = vld [vmem:[%s6 + $0x20] sm:$0xff]
    %v213 = vld [vmem:[%s6 + $0x28] sm:$0xff]
    %v214 = vld [vmem:[%s6 + $0x30] sm:$0xff]
    %v215 = vld [vmem:[%s6 + $0x38] sm:$0xff]
    %v216 = vld [vmem:[%s7] sm:$0x1]
    %v218 = vlaneseq
    %v219 = vshrl.u32 %v218, 7
    %v220 = vsub.s32 0, %v219
    %v221 = vrot.slane %v216, %v220
    %v224 = vsel %vm133, %v207, 0
    %226 = vmatprep.subr.mxu0 0.0
    %227 = vmatpush1.msra.mxu0 %v208
    %228 = vmatprep.subr.mxu0 0.0
    %229 = vmatpush1.msra.mxu0 %v209
    %230 = vmatprep.subr.mxu0 0.0
    %231 = vmatpush1.msra.mxu0 %v210
    %232 = vmatprep.subr.mxu0 0.0
    %233 = vmatpush1.msra.mxu0 %v211
    %234 = vmatprep.subr.mxu0 0.0
    %235 = vmatpush1.msra.mxu0 %v212
    %236 = vmatprep.subr.mxu0 0.0
    %237 = vmatpush1.msra.mxu0 %v213
    %238 = vmatprep.subr.mxu0 0.0
    %239 = vmatpush1.msra.mxu0 %v214
    %240 = vmatprep.subr.mxu0 0.0
    %241 = vmatpush1.msra.mxu0 %v215
    %242 = vmatprep.subr.mxu0 0.0
    %243 = vmatpush1.msra.mxu0 0.0
    %244 = vmatprep.subr.mxu0 0.0
    %245 = vmatpush1.msra.mxu0 0.0
    %246 = vmatprep.subr.mxu0 0.0
    %247 = vmatpush1.msra.mxu0 0.0
    %248 = vmatprep.subr.mxu0 0.0
    %249 = vmatpush1.msra.mxu0 0.0
    %250 = vmatprep.subr.mxu0 0.0
    %251 = vmatpush1.msra.mxu0 0.0
    %252 = vmatprep.subr.mxu0 0.0
    %253 = vmatpush1.msra.mxu0 0.0
    %254 = vmatprep.subr.mxu0 0.0
    %255 = vmatpush1.msra.mxu0 0.0
    %256 = vmatprep.subr.mxu0 0.0
    %257 = vmatpush1.msra.mxu0 0.0
    %258 = vmatprep.subr.mxu0 0.0
    %259 = vmatpush1.msra.mxu0 0.0
    %260 = vmatprep.subr.mxu0 0.0
    %261 = vmatpush1.msra.mxu0 0.0
    %262 = vmatprep.subr.mxu0 0.0
    %263 = vmatpush1.msra.mxu0 0.0
    %264 = vmatprep.subr.mxu0 0.0
    %265 = vmatpush1.msra.mxu0 0.0
    %266 = vmatprep.subr.mxu0 0.0
    %267 = vmatpush1.msra.mxu0 0.0
    %268 = vmatprep.subr.mxu0 0.0
    %269 = vmatpush1.msra.mxu0 0.0
    %270 = vmatprep.subr.mxu0 0.0
    %271 = vmatpush1.msra.mxu0 0.0
    %272 = vmatprep.subr.mxu0 0.0
    %273 = vmatpush1.msra.mxu0 0.0
    %274 = vmatprep.subr.mxu0 0.0
    %275 = vmatpush1.msra.mxu0 0.0
    %276 = vmatprep.subr.mxu0 0.0
    %277 = vmatpush1.msra.mxu0 0.0
    %278 = vmatprep.subr.mxu0 0.0
    %279 = vmatpush1.msra.mxu0 0.0
    %280 = vmatprep.subr.mxu0 0.0
    %281 = vmatpush1.msra.mxu0 0.0
    %282 = vmatprep.subr.mxu0 0.0
    %283 = vmatpush1.msra.mxu0 0.0
    %284 = vmatprep.subr.mxu0 0.0
    %285 = vmatpush1.msra.mxu0 0.0
    %286 = vmatprep.subr.mxu0 0.0
    %287 = vmatpush1.msra.mxu0 0.0
    %288 = vmatprep.subr.mxu0 0.0
    %289 = vmatpush1.msra.mxu0 0.0
    %290 = vmatprep.mubr.f32.mxu0 0.0
    %291 = vmatmul.mubr.f32.gmra.mrb[0].mxu0 %v224
    %v292 = vpop.f32.mrb[0].mxu0
    %v293 = vadd.f32 %v221, %v292
    %v294 = vpop.f32.mrb[0].mxu0
    %295 = vdwg.mxu0
    %v296 = vld [vmem:[%s8] sm:$0x1f]
    %v297 = vtanh.pop %v293
    %v298 = vlaneseq
    %v299 = vshrl.u32 %v298, 7
    %v300 = vsub.s32 0, %v299
    %v301 = vrot.slane %v296, %v300
    %v302 = vmul.f32 %v297, %v301
    %v303 = vlaneseq
    %v304 = vshrl.u32 %v303, 7
    %v305 = vsub.s32 1, %v304
    %v306 = vrot.slane %v296, %v305
    %v307 = vadd.f32 %v302, %v306
    %v308 = vld [vmem:[%s1] sm:$0xff]
    %v309 = vlaneseq
    %v310 = vshrl.u32 %v309, 7
    %v311 = vsub.s32 2, %v310
    %v312 = vrot.slane %v296, %v311
    %v313 = vmul.f32 %v312, %v308
    %v314 = vadd.f32 %v307, %v313
    %v315 = vsub.f32 %v314, %v307
    %v316 = vmul.f32 %v315, %v315
    %v317 = vlaneseq
    %v318 = vshrl.u32 %v317, 7
    %v319 = vsub.s32 3, %v318
    %v320 = vrot.slane %v296, %v319
    %v321 = vmul.f32 %v316, %v320
    %vm322 = vcmask 31744
    %v323 = vsel %vm322, %v321, 0.0
    %324 = vadd.xlane.f32.xlu0 %v323
    %v325 = vpop.xlane.xlu0 %324
    %v326 = vsub.f32 0.0, %v325
    %v327 = vlaneseq
    %v328 = vshrl.u32 %v327, 7
    %v329 = vsub.s32 4, %v328
    %v330 = vrot.slane %v296, %v329
    %v331 = vsub.f32 %v326, %v330
    %333 = vrot.lane.b32.xlu0 %v331, 4
    %v334 = vpop.permute.xlu0 %333
    %337 = vrot.lane.b32.xlu0 %v293, 1
    %v338 = vpop.permute.xlu0 %337
    %v340 = vsel %vm322, %v314, %v334
    %vm341 = vcmask 39936
    %v342 = vsel %vm341, %v340, %v338
    %343 = vxpose.xlu0.b32.start [1/16] %v342, 128
    %344 = vxpose.xlu0.b32.cont [2/16] 0.0, 128
    %345 = vxpose.xlu0.b32.cont [3/16] 0.0, 128
    %346 = vxpose.xlu0.b32.cont [4/16] 0.0, 128
    %347 = vxpose.xlu0.b32.cont [5/16] 0.0, 128
    %348 = vxpose.xlu0.b32.cont [6/16] 0.0, 128
    %349 = vxpose.xlu0.b32.cont [7/16] 0.0, 128
    %350 = vxpose.xlu0.b32.cont [8/16] 0.0, 128
    %351 = vxpose.xlu0.b32.cont [9/16] 0.0, 128
    %352 = vxpose.xlu0.b32.cont [10/16] 0.0, 128
    %353 = vxpose.xlu0.b32.cont [11/16] 0.0, 128
    %354 = vxpose.xlu0.b32.cont [12/16] 0.0, 128
    %355 = vxpose.xlu0.b32.cont [13/16] 0.0, 128
    %356 = vxpose.xlu0.b32.cont [14/16] 0.0, 128
    %357 = vxpose.xlu0.b32.cont [15/16] 0.0, 128
    %358 = vxpose.xlu0.b32.end [16/16] 0.0, 128
    %v359 = vpop.trf.xlu0
    %v360 = vpop.trf.xlu0
    %v361 = vpop.trf.xlu0
    %v362 = vpop.trf.xlu0
    %v363 = vpop.trf.xlu0
    %v364 = vpop.trf.xlu0
    %v365 = vpop.trf.xlu0
    %v366 = vpop.trf.xlu0
    %v367 = vpop.trf.xlu0
    %v368 = vpop.trf.xlu0
    %v369 = vpop.trf.xlu0
    %v370 = vpop.trf.xlu0
    %v371 = vpop.trf.xlu0
    %v372 = vpop.trf.xlu0
    %v373 = vpop.trf.xlu0
    %v374 = vpop.trf.xlu0
    %vm375 = vcmask 62464
    %376 = vst.msk [vmem:[#allocation2] sm:$0x3f] %vm375, %v359
    // Predicated region
    $region38: #{tpu_custom_call.1} parent=1 // pred_check
      _
    $region39: #{tpu_custom_call.1} parent=1 // pred_check_branch
      %378 = sbr.rel (0) target = $region41
    $region40: #{tpu_custom_call.1} parent=1 // pred_region
      %s380 = ssub.s32 128, 128
      %381 = vsyncadd [#allocation3], %s380
      %s383 = sshll.u32 [#allocation2], 4
      %s384 = int_to_ptr.vmem [resolvable:$true] %s383
      %386 = dma.vmem_to_hbm [thread:$0]  %s384, 128, %s9, [#allocation3]
    $region41: #{tpu_custom_call.1} parent=1 // pred_fallthru
      _
    // Predicated region
    $region42: #{tpu_custom_call.1} parent=1 // pred_check
      _
    $region43: #{tpu_custom_call.1} parent=1 // pred_check_branch
      %388 = sbr.rel (0) target = $region45
    $region44: #{tpu_custom_call.1} parent=1 // pred_region
      %389 = dma.done [#allocation3], 128
    $region45: #{tpu_custom_call.1} parent=1 // pred_fallthru
      _
    %390 = vsyncpa [#allocation3], 1

</llo_original>
